<compile_context>
chip_gen: v5e
topology: v5e:2x2
jax: 0.10.0
libtpu: 0.0.40
codegen_flags: <defaults>
</compile_context>

<pallas_src>
import jax
import jax.numpy as jnp
from jax.experimental import pallas as pl
from jax.experimental.pallas import tpu as pltpu

_LANE = 128
_SUBLANE = 8
# ~4 MiB per input tile: at v7x's ~3.2 TB/s a tile takes ~1.3 us vs ~0.35 us
# fixed step overhead (<25% overhead, ~roofline); at v5e's ~0.8 TB/s it is
# ~5 us (<10% overhead). 2 buffers x (in + out) x 4 MiB = 16 MiB of VMEM.
_TARGET_TILE_BYTES = 4 << 20


def _copy_kernel(x_ref, o_ref):
    # Pure passthrough: copy the current VMEM tile to the output tile.
    o_ref[...] = x_ref[...]


def identity(inputs_embeds: jax.Array, *args, **kwargs) -> jax.Array:
    """Identity.forward(inputs_embeds, *args, **kwargs) -> inputs_embeds.

    Fast path: no kernel. Identity does zero useful work, so the optimal
    "kernel" is no kernel at all (zero HBM traffic).
    """
    return inputs_embeds


def _cdiv(a: int, b: int) -> int:
    return -(-a // b)


def _pick_cols(total: int, last_dim: int) -> int:
    """Pick a lane dimension for the flattened (rows, cols) copy.

    Prefer the largest multiple of 128 that divides `total` (fully unmasked,
    lane-dense stores). If no multiple of 128 divides `total`, fall back to
    the largest divisor of `total` <= 1024 (partially masked stores are then
    unavoidable).
    """
    for mult in (1024, 896, 768, 640, 512, 384, 256, _LANE):
        if total % mult == 0:
            return mult
    # TODO(synk): sub-128-aligned lane dim -> some masked vst.msk stores; this
    # is unavoidable when total is not a multiple of 128.
    best = min(last_dim, total) if last_dim > 0 else 1
    if total % best != 0 or best > 1024:
        best = 1
    d = 1
    while d * d <= total:
        if total % d == 0:
            for c in (d, total // d):
                if c <= 1024 and c > best:
                    best = c
        d += 1
    return max(best, 1)


def identity_materialized(inputs_embeds: jax.Array) -> jax.Array:
    """Identity that produces a distinct (materialized) output buffer via a
    lane-dense, byte-tiled Pallas copy kernel. Only use this when the graph
    genuinely needs a separate buffer; otherwise call `identity()`."""
    orig_shape = inputs_embeds.shape
    total = int(inputs_embeds.size)
    if total == 0:
        return inputs_embeds
    dtype = inputs_embeds.dtype
    itemsize = jnp.dtype(dtype).itemsize

    last_dim = orig_shape[-1] if len(orig_shape) > 0 else 1
    cols = _pick_cols(total, last_dim)
    rows = total // cols
    flat = inputs_embeds.reshape(rows, cols)

    row_bytes = cols * itemsize
    # Byte-based row-tile target, rounded down to the 8-row sublane granularity.
    max_rows = max(_SUBLANE, (_TARGET_TILE_BYTES // row_bytes) // _SUBLANE * _SUBLANE)

    if rows <= max_rows:
        # Whole array fits one tile's byte budget: full-extent block is legal
        # regardless of divisibility.
        block_rows = rows
        # v7x megacore: give the single "parallel" axis >= 2 grid steps when
        # the copy is big enough to matter and splits on the 8-row boundary.
        if rows >= 2 * _SUBLANE and total * itemsize >= (2 << 20):
            half = (rows + 1) // 2
            block_rows = _cdiv(half, _SUBLANE) * _SUBLANE
    else:
        block_rows = max_rows

    grid = (_cdiv(rows, block_rows),)

    block_bytes = block_rows * cols * itemsize
    # 2 arrays (in + out) x 2-deep pipelining, plus ~1 MiB slack for internal
    # scratch. Exceeds 32 MiB only in the pathological fallback case (huge,
    # non-tileable last dim), where raising the limit is the only legal option.
    vmem_limit = int(max(32 << 20, 4 * block_bytes + (1 << 20)))

    spec = pl.BlockSpec((block_rows, cols), lambda i: (i, 0))

    out_flat = pl.pallas_call(
        _copy_kernel,
        out_shape=jax.ShapeDtypeStruct((rows, cols), dtype),
        grid_spec=pltpu.PrefetchScalarGridSpec(
            num_scalar_prefetch=0,
            grid=grid,
            in_specs=[spec],
            out_specs=spec,
        ),
        # Advisory: pure DMA, zero flops -> scheduler can overlap neighbors.
        cost_estimate=pl.CostEstimate(
            flops=0, transcendentals=0, bytes_accessed=2 * total * itemsize
        ),
        compiler_params=pltpu.CompilerParams(
            dimension_semantics=("parallel",),
            vmem_limit_bytes=vmem_limit,
        ),
    )(flat)

    return out_flat.reshape(orig_shape)


if __name__ == "__main__":
    key = jax.random.PRNGKey(0)
    # Small shape consistent with a transformer embedding tensor.
    batch, seq, hidden = 2, 8, 32
    inputs_embeds = jax.random.normal(key, (batch, seq, hidden), dtype=jnp.float32)

    # 1) Fast path — exactly matches nn.Identity: no kernel, no copy.
    out_fast = jax.block_until_ready(identity(inputs_embeds, None, attention_mask=None))
    assert out_fast.shape == inputs_embeds.shape
    assert out_fast.dtype == inputs_embeds.dtype
    assert bool(jnp.array_equal(out_fast, inputs_embeds))

    # 2) Materialized path — run the Pallas copy kernel (lane-dense main path).
    out_copy = jax.block_until_ready(identity_materialized(inputs_embeds))
    assert out_copy.shape == inputs_embeds.shape
    assert out_copy.dtype == inputs_embeds.dtype
    assert bool(jnp.array_equal(out_copy, inputs_embeds))

    # 3) Exercise the non-128-divisible fallback path once for robustness.
    x_odd = jax.random.normal(jax.random.PRNGKey(0), (2, 8, 33), dtype=jnp.float32)
    out_odd = jax.block_until_ready(identity_materialized(x_odd))
    assert out_odd.shape == x_odd.shape and out_odd.dtype == x_odd.dtype
    assert bool(jnp.array_equal(out_odd, x_odd))

    print("KERNEL_OK")
</pallas_src>

<mosaic_0001>
module attributes {stable_mosaic.version = 11 : i64} {
  func.func @_copy_kernel(%arg0: i32, %arg1: memref<1x512xf32, #tpu.memory_space<vmem>>, %arg2: memref<1x512xf32, #tpu.memory_space<vmem>>) attributes {dimension_semantics = [#tpu.dimension_semantics<parallel>], iteration_bounds = array<i64: 1>, scalar_prefetch = 0 : i64, scratch_operands = 0 : i64, tpu.core_type = #tpu.core_type<tc>, window_params = [{transform_indices = @transform_0, window_bounds = array<i64: 1, 512>}, {transform_indices = @transform_1, window_bounds = array<i64: 1, 512>}]} {
    %c0 = arith.constant 0 : index
    %c0_0 = arith.constant 0 : index
    %0 = vector.load %arg1[%c0, %c0_0] : memref<1x512xf32, #tpu.memory_space<vmem>>, vector<1x512xf32>
    %c0_1 = arith.constant 0 : index
    %c0_2 = arith.constant 0 : index
    %1 = vector.load %arg2[%c0_1, %c0_2] : memref<1x512xf32, #tpu.memory_space<vmem>>, vector<1x512xf32>
    tpu.vector_store %arg2[%c0_1, %c0_2], %0 {strides = array<i32>} : memref<1x512xf32, #tpu.memory_space<vmem>>, vector<1x512xf32>,
    return
  }
  func.func @transform_0(%arg0: i32) -> (i32, i32) {
    %c0_i32 = arith.constant 0 : i32
    %c0_i32_0 = arith.constant 0 : i32
    return %arg0, %c0_i32 : i32, i32
  }
  func.func @transform_1(%arg0: i32) -> (i32, i32) {
    %c0_i32 = arith.constant 0 : i32
    %c0_i32_0 = arith.constant 0 : i32
    return %arg0, %c0_i32 : i32, i32
  }
}

</mosaic_0001>

<llo_original>
// kernel: tpu_custom_call.1
$region0: #{tpu_custom_call.1}
  #allocation0 [shape = 'u32[]', space=smem, size = 0x4, offset = 0x4, fixed_abs, tag = 'smem constant byte address 0x4 - core index']
  #allocation1 [shape = 'u32[72,128]{1,0:T(1,128)}', space=vmem, size = 0x9000, scoped, tag = 'internal scratch']
  %s0 = inlined_call_operand.hbm [shape: f32[1,512], index: 0, kind: input, shape index: {}]
  %s1 = inlined_call_operand.hbm [shape: f32[1,512], index: 1, kind: output, shape index: {}]
  %s2 = sld [smem:[#allocation0]]
  $region18: #{tpu_custom_call.1} parent=0
    _
  %s4 = ssub.s32 1, %s2
  %s5 = scalar_select 0, %s4, %s2
  $region1: #{tpu_custom_call.1} parent=0
    #allocation2 [shape = 'u8[2048]{0}', space=vmem, size = 0x800, scoped, tag = 'input window, operand 0, single buffered']
    #allocation3 [shape = 's32[1]{0}', space=sflag, size = 0x4, scoped, tag = 'scoped memory for tpu_custom_call.1']
    #allocation4 [shape = 's32[1]{0}', space=sflag, size = 0x4, scoped, tag = 'scoped memory for tpu_custom_call.1']
    #allocation5 [shape = 'u8[2048]{0}', space=vmem, size = 0x800, scoped, tag = 'output window, operand 0, single buffered']
    %6 = vsyncpa [#allocation3], 0
    %7 = vsyncpa [#allocation4], 0
    // Predicated region
    $region2: #{tpu_custom_call.1} parent=1 // pred_check
      _
    $region3: #{tpu_custom_call.1} parent=1 // pred_check_branch
      %9 = sbr.rel (0) target = $region5
    $region4: #{tpu_custom_call.1} parent=1 // pred_region
      %11 = vsyncadd [#allocation3], 0
      %s13 = sshll.u32 %s0, 4
      %s14 = int_to_ptr.hbm [resolvable:$true] %s13
      %s15 = sshll.u32 [#allocation2], 4
      %s16 = int_to_ptr.vmem [resolvable:$true] %s15
      %18 = dma.hbm_to_vmem [thread:$0]  %s14, 64, %s16, [#allocation3]
    $region5: #{tpu_custom_call.1} parent=1 // pred_fallthru
      _
    // Predicated region
    $region6: #{tpu_custom_call.1} parent=1 // pred_check
      _
    $region7: #{tpu_custom_call.1} parent=1 // pred_check_branch
      %20 = sbr.rel (0) target = $region9
    $region8: #{tpu_custom_call.1} parent=1 // pred_region
      %22 = dma.done [#allocation3], 64
    $region9: #{tpu_custom_call.1} parent=1 // pred_fallthru
      _
    %v23 = vld [vmem:[#allocation2] sm:$0xf]
    %v24 = vlaneseq
    %vm25 = vcmp.ge.s32.totalorder %v24, 0
    %vm26 = vcmp.lt.s32.totalorder %v24, 512
    %vm27 = vmand %vm25, %vm26
    %28 = vst.msk [vmem:[#allocation5] sm:$0xf] %vm27, %v23
    // Predicated region
    $region10: #{tpu_custom_call.1} parent=1 // pred_check
      _
    $region11: #{tpu_custom_call.1} parent=1 // pred_check_branch
      %30 = sbr.rel (0) target = $region13
    $region12: #{tpu_custom_call.1} parent=1 // pred_region
      %32 = vsyncadd [#allocation4], 0
      %s34 = sshll.u32 [#allocation5], 4
      %s35 = int_to_ptr.vmem [resolvable:$true] %s34
      %s36 = sshll.u32 %s1, 4
      %s37 = int_to_ptr.hbm [resolvable:$true] %s36
      %39 = dma.vmem_to_hbm [thread:$0]  %s35, 64, %s37, [#allocation4]
    $region13: #{tpu_custom_call.1} parent=1 // pred_fallthru
      _
    // Predicated region
    $region14: #{tpu_custom_call.1} parent=1 // pred_check
      _
    $region15: #{tpu_custom_call.1} parent=1 // pred_check_branch
      %41 = sbr.rel (0) target = $region17
    $region16: #{tpu_custom_call.1} parent=1 // pred_region
      %43 = dma.done [#allocation4], 64
    $region17: #{tpu_custom_call.1} parent=1 // pred_fallthru
      _
    %44 = vsyncpa [#allocation3], 1
    %45 = vsyncpa [#allocation4], 1

</llo_original>
